<compile_context>
chip_gen: v5e
topology: v5e:2x2
jax: 0.10.0
libtpu: 0.0.40
codegen_flags: <defaults>
</compile_context>

<pallas_src>
import functools

import jax
import jax.numpy as jnp
from jax import lax
from jax.experimental import pallas as pl
from jax.experimental.pallas import tpu as pltpu


def _global_attention_kernel(enc_ref, dec_ref, w1_ref, w2_ref, consts_ref,
                             ctx_ref, attn_ref, *, s_valid, ctx_on_mxu):
    TB, S, D = enc_ref.shape
    mm_dtype = w1_ref.dtype            # matmul dtype (bf16 on the opt-in path)

    enc = enc_ref[...]                                     # (TB, S, D)
    enc_mm = enc.astype(mm_dtype)
    enc_flat = enc_mm.reshape(TB * S, D)                   # free: S is 8-aligned

    # Fat MXU matmul: M = TB*S encoder rows against W1^T.
    h1 = jnp.dot(enc_flat, w1_ref[...],
                 preferred_element_type=jnp.float32)       # (TB*S, D) f32

    # Decoder projection; fold (b1 + b2) once into the (TB, D) row instead of
    # adding a bias over the whole (TB*S, D) tile.
    h2 = jnp.dot(dec_ref[...].astype(mm_dtype), w2_ref[...],
                 preferred_element_type=jnp.float32)
    h2 = h2 + consts_ref[0:1, :]                           # (TB, D) f32

    t = jnp.tanh(h1.reshape(TB, S, D) + h2[:, None, :])    # (TB, S, D) f32

    # V projection: VPU multiply + lane reduce (an N=1 matmul would idle
    # 127/255 of the MXU output lanes).  V's bias is dropped: softmax is
    # shift invariant, so it cannot change attn or the context vector.
    vrow = consts_ref[1:2, :].reshape(1, 1, D)
    scores = jnp.sum(t * vrow, axis=-1)                    # (TB, S) f32, lane-dense

    if s_valid < S:  # static branch: mask padded sequence positions
        col = lax.broadcasted_iota(jnp.int32, (TB, S), 1)
        scores = jnp.where(col < s_valid, scores, jnp.float32(-1e30))

    # Softmax over the sequence axis (PyTorch dim=1), lane-dense over S.
    m = jnp.max(scores, axis=-1, keepdims=True)
    e = jnp.exp(scores - m)
    denom = jnp.sum(e, axis=-1, keepdims=True)
    # approx=True would use the free EUP vrcp slot but is only ~12-bit accurate;
    # keep the exact reciprocal so attn matches the f32 reference to 1e-5.
    attn = e * pl.reciprocal(denom, approx=False)          # (TB, S) f32

    if ctx_on_mxu:
        # context_vector = sum_s attn[b,s] * enc[b,s,:] as a batched MXU
        # contraction; attn cast to the matmul dtype so a bf16 enc tile is not
        # promoted to f32 by a mixed-precision contraction.
        ctx = jnp.einsum('bqs,bsd->bqd',
                         attn[:, None, :].astype(mm_dtype), enc_mm,
                         preferred_element_type=jnp.float32)[:, 0, :]
    else:
        # Pure-VPU fallback (broadcast multiply + sublane reduce) for v5e.
        ctx = jnp.sum(attn[:, :, None] * enc.astype(jnp.float32), axis=1)

    ctx_ref[...] = ctx.astype(ctx_ref.dtype)
    attn_ref[...] = attn.astype(attn_ref.dtype)


def _round_up(x, m):
    return ((x + m - 1) // m) * m


def _vmem_budget_bytes():
    """~3/4 of per-core VMEM: ~48 MiB on v7x, ~96 MiB on v5e/v6e."""
    try:
        cap = int(pltpu.get_tpu_info().vmem_capacity_bytes)
    except Exception:
        cap = 64 * 1024 * 1024        # conservative (v7x-sized) fallback
    return (cap * 3) // 4


def _vmem_estimate(tb, s_pad, d, mm_itemsize, enc_buffers):
    """Explicit per-grid-step VMEM sum (weights are single-buffered)."""
    enc = enc_buffers * tb * s_pad * d * mm_itemsize       # pipelined enc tiles
    dec = 2 * tb * d * mm_itemsize
    wts = 2 * d * d * mm_itemsize                          # W1^T, W2^T Buffered(1)
    consts = 8 * d * 4                                     # (2,D) f32, 8-sublane pad
    outs = 2 * tb * d * 4 + 2 * tb * s_pad * 4             # ctx + attn (f32)
    acts = 3 * tb * s_pad * d * 4                          # h1 / tanh / ctx temps (f32)
    return enc + dec + wts + consts + outs + acts


def _choose_batch_tile(B, s_pad, d, mm_itemsize, enc_buffers, vmem_budget):
    """Largest 8-aligned batch tile dividing the padded batch that fits VMEM.

    Capped at half the padded batch when B >= 16 so the parallel batch axis
    has >= 2 grid steps (v7x megacore).  Restricting to divisors of the
    8-padded batch keeps padding waste at <= 7 rows.
    """
    b8 = _round_up(B, 8)
    cap = b8 if b8 < 16 else max(8, ((b8 // 2) // 8) * 8)
    best = 8
    for tb in range(8, cap + 1, 8):
        if b8 % tb == 0 and _vmem_estimate(tb, s_pad, d, mm_itemsize,
                                           enc_buffers) <= vmem_budget:
            best = tb
    return best


def global_attention(encoder_output, decoder_h, params, *, batch_tile=None,
                     enc_buffers=2, ctx_on_mxu=True, use_bf16=False):
    B, S, D = encoder_output.shape
    orig_dtype = encoder_output.dtype
    mm_dtype = jnp.bfloat16 if use_bf16 else orig_dtype
    mm_itemsize = jnp.dtype(mm_dtype).itemsize

    S_pad = _round_up(S, 8)
    budget = _vmem_budget_bytes()
    if batch_tile is None:
        TB = _choose_batch_tile(B, S_pad, D, mm_itemsize, enc_buffers, budget)
    else:
        TB = int(batch_tile)
        assert TB % 8 == 0, "batch_tile must be a multiple of 8"
    B_pad = _round_up(B, TB)

    # Pad batch / sequence so every block keeps (8,128)-friendly dims; padded
    # sequence positions are masked inside the kernel, padded batch rows are
    # sliced off below.
    enc = encoder_output.astype(mm_dtype)
    dec = decoder_h.astype(mm_dtype)
    if S_pad != S:
        enc = jnp.pad(enc, ((0, 0), (0, S_pad - S), (0, 0)))
    if B_pad != B:
        enc = jnp.pad(enc, ((0, B_pad - B), (0, 0), (0, 0)))
        dec = jnp.pad(dec, ((0, B_pad - B), (0, 0)))

    # nn.Linear does y = x @ W^T + b, so pre-transpose the weights.
    w1_t = params["w1"].T.astype(mm_dtype)                  # (D, D)
    w2_t = params["w2"].T.astype(mm_dtype)                  # (D, D)
    # Packed constants: row 0 = b1 + b2 (folded bias), row 1 = V weight.
    # V's bias is intentionally omitted (softmax shift invariance).
    consts = jnp.concatenate(
        [(params["b1"] + params["b2"]).reshape(1, D),
         params["vw"].reshape(1, D)], axis=0).astype(jnp.float32)   # (2, D)

    est = _vmem_estimate(TB, S_pad, D, mm_itemsize, enc_buffers)
    vmem_limit = int(min(budget, max(32 * 1024 * 1024, (5 * est) // 4)))

    cost = pl.CostEstimate(
        flops=(2 * B_pad * S_pad * D * D + 2 * B_pad * D * D
               + 2 * B_pad * S_pad * D + 2 * B_pad * S_pad * D),
        transcendentals=B_pad * S_pad * D + B_pad * S_pad,
        bytes_accessed=((B_pad * S_pad * D + B_pad * D + 2 * D * D) * mm_itemsize
                        + 2 * D * 4
                        + B_pad * D * jnp.dtype(orig_dtype).itemsize
                        + B_pad * S_pad * 4),
    )

    if enc_buffers == 2:
        enc_spec = pl.BlockSpec((TB, S_pad, D), lambda b: (b, 0, 0))
    else:  # e.g. Buffered(3) on bandwidth-poor v5e if the enc DMA is exposed
        enc_spec = pl.BlockSpec((TB, S_pad, D), lambda b: (b, 0, 0),
                                pipeline_mode=pl.Buffered(enc_buffers))

    def resident(shape):  # constant index_map -> single buffer is enough
        return pl.BlockSpec(shape, lambda b: (0, 0),
                            pipeline_mode=pl.Buffered(1))

    kernel = functools.partial(_global_attention_kernel,
                               s_valid=S, ctx_on_mxu=ctx_on_mxu)

    ctx, attn = pl.pallas_call(
        kernel,
        out_shape=(
            jax.ShapeDtypeStruct((B_pad, D), orig_dtype),        # context_vector
            jax.ShapeDtypeStruct((B_pad, S_pad), jnp.float32),   # attn, lane-dense f32
        ),
        grid_spec=pltpu.PrefetchScalarGridSpec(
            num_scalar_prefetch=0,
            grid=(B_pad // TB,),
            in_specs=[
                enc_spec,                                        # encoder_output
                pl.BlockSpec((TB, D), lambda b: (b, 0)),         # decoder_h
                resident((D, D)),                                # W1^T
                resident((D, D)),                                # W2^T
                resident((2, D)),                                # [b1+b2 ; V weight]
            ],
            out_specs=[
                pl.BlockSpec((TB, D), lambda b: (b, 0)),         # context_vector
                pl.BlockSpec((TB, S_pad), lambda b: (b, 0)),     # attention (B, S)
            ],
        ),
        compiler_params=pltpu.CompilerParams(
            dimension_semantics=("parallel",),
            vmem_limit_bytes=vmem_limit,
        ),
        cost_estimate=cost,
    )(enc, dec, w1_t, w2_t, consts)

    # Strip padding and restore PyTorch's (B, S, 1) attention-weights layout.
    ctx = ctx[:B]
    attn = attn[:B, :S].reshape(B, S, 1)     # kept f32 (matches f32 reference)
    return ctx, attn


def init_params(key, dense_dim):
    k1, k2, k3, k4, k5, k6 = jax.random.split(key, 6)
    # PyTorch shapes: W1/W2 weight (D, D), V weight (1, D); std=0.01 normal init.
    return {
        "w1": 0.01 * jax.random.normal(k1, (dense_dim, dense_dim), jnp.float32),
        "b1": 0.01 * jax.random.normal(k2, (dense_dim,), jnp.float32),
        "w2": 0.01 * jax.random.normal(k3, (dense_dim, dense_dim), jnp.float32),
        "b2": 0.01 * jax.random.normal(k4, (dense_dim,), jnp.float32),
        "vw": 0.01 * jax.random.normal(k5, (1, dense_dim), jnp.float32),
        "vb": 0.01 * jax.random.normal(k6, (1,), jnp.float32),
    }


def reference(encoder_output, decoder_h, p):
    dec = decoder_h[:, None, :]                                  # (B, 1, D)
    h = (encoder_output @ p["w1"].T + p["b1"]) + (dec @ p["w2"].T + p["b2"])
    t = jnp.tanh(h)
    scores = t @ p["vw"].T + p["vb"]                             # (B, S, 1)
    attn = jax.nn.softmax(scores, axis=1)
    ctx = jnp.sum(attn * encoder_output, axis=1)
    return ctx, attn


if __name__ == "__main__":
    B, S, D = 2, 8, 32
    key = jax.random.PRNGKey(0)
    kp, ke, kd = jax.random.split(key, 3)
    params = init_params(kp, D)
    encoder_output = jax.random.normal(ke, (B, S, D), jnp.float32)
    decoder_h = jax.random.normal(kd, (B, D), jnp.float32)

    ctx, attn = global_attention(encoder_output, decoder_h, params)
    jax.block_until_ready((ctx, attn))

    ctx_ref, attn_ref = reference(encoder_output, decoder_h, params)
    assert jnp.allclose(ctx, ctx_ref, atol=1e-5, rtol=1e-5)
    assert jnp.allclose(attn, attn_ref, atol=1e-5, rtol=1e-5)
    print("KERNEL_OK")
</pallas_src>

<mosaic_0001>
module attributes {stable_mosaic.version = 11 : i64} {
  func.func @_global_attention_kernel(%arg0: i32, %arg1: memref<8x8x32xf32, #tpu.memory_space<vmem>>, %arg2: memref<8x32xf32, #tpu.memory_space<vmem>>, %arg3: memref<32x32xf32, #tpu.memory_space<vmem>>, %arg4: memref<32x32xf32, #tpu.memory_space<vmem>>, %arg5: memref<2x32xf32, #tpu.memory_space<vmem>>, %arg6: memref<8x32xf32, #tpu.memory_space<vmem>>, %arg7: memref<8x8xf32, #tpu.memory_space<vmem>>) attributes {dimension_semantics = [#tpu.dimension_semantics<parallel>], iteration_bounds = array<i64: 1>, scalar_prefetch = 0 : i64, scratch_operands = 0 : i64, tpu.core_type = #tpu.core_type<tc>, window_params = [{transform_indices = @transform_0, window_bounds = array<i64: 8, 8, 32>}, {transform_indices = @transform_1, window_bounds = array<i64: 8, 32>}, {pipeline_mode = #tpu.pipeline_mode<synchronous>, transform_indices = @transform_2, window_bounds = array<i64: 32, 32>}, {pipeline_mode = #tpu.pipeline_mode<synchronous>, transform_indices = @transform_3, window_bounds = array<i64: 32, 32>}, {pipeline_mode = #tpu.pipeline_mode<synchronous>, transform_indices = @transform_4, window_bounds = array<i64: 2, 32>}, {transform_indices = @transform_5, window_bounds = array<i64: 8, 32>}, {transform_indices = @transform_6, window_bounds = array<i64: 8, 8>}]} {
    %c0 = arith.constant 0 : index
    %c0_0 = arith.constant 0 : index
    %c0_1 = arith.constant 0 : index
    %0 = vector.load %arg1[%c0, %c0_0, %c0_1] : memref<8x8x32xf32, #tpu.memory_space<vmem>>, vector<8x8x32xf32>
    %1 = vector.shape_cast %0 : vector<8x8x32xf32> to vector<64x32xf32>
    %c0_2 = arith.constant 0 : index
    %c0_3 = arith.constant 0 : index
    %2 = vector.load %arg3[%c0_2, %c0_3] : memref<32x32xf32, #tpu.memory_space<vmem>>, vector<32x32xf32>
    %cst = arith.constant dense<0.000000e+00> : vector<64x32xf32>
    %3 = tpu.matmul %1, %2, %cst {dimension_numbers = #tpu.dot_dimension_numbers<[1], [0], [0], [1], [0, 0, 1, 1], [], []>} : vector<64x32xf32>, vector<32x32xf32>, vector<64x32xf32> -> vector<64x32xf32>
    %c0_4 = arith.constant 0 : index
    %c0_5 = arith.constant 0 : index
    %4 = vector.load %arg2[%c0_4, %c0_5] : memref<8x32xf32, #tpu.memory_space<vmem>>, vector<8x32xf32>
    %c0_6 = arith.constant 0 : index
    %c0_7 = arith.constant 0 : index
    %5 = vector.load %arg4[%c0_6, %c0_7] : memref<32x32xf32, #tpu.memory_space<vmem>>, vector<32x32xf32>
    %cst_8 = arith.constant dense<0.000000e+00> : vector<8x32xf32>
    %6 = tpu.matmul %4, %5, %cst_8 {dimension_numbers = #tpu.dot_dimension_numbers<[1], [0], [0], [1], [0, 0, 1, 1], [], []>} : vector<8x32xf32>, vector<32x32xf32>, vector<8x32xf32> -> vector<8x32xf32>
    %c0_9 = arith.constant 0 : index
    %c0_10 = arith.constant 0 : index
    %7 = vector.load %arg5[%c0_9, %c0_10] : memref<2x32xf32, #tpu.memory_space<vmem>>, vector<1x32xf32>
    %8 = vector.broadcast %7 : vector<1x32xf32> to vector<8x32xf32>
    %9 = arith.addf %6, %8 : vector<8x32xf32>
    %10 = vector.shape_cast %3 : vector<64x32xf32> to vector<8x8x32xf32>
    %11 = vector.shape_cast %9 : vector<8x32xf32> to vector<8x1x32xf32>
    %12 = vector.broadcast %11 : vector<8x1x32xf32> to vector<8x8x32xf32>
    %13 = arith.addf %10, %12 : vector<8x8x32xf32>
    %14 = math.tanh %13 : vector<8x8x32xf32>
    %c1 = arith.constant 1 : index
    %c0_11 = arith.constant 0 : index
    %15 = vector.load %arg5[%c1, %c0_11] : memref<2x32xf32, #tpu.memory_space<vmem>>, vector<1x32xf32>
    %16 = vector.shape_cast %15 : vector<1x32xf32> to vector<1x1x32xf32>
    %17 = vector.broadcast %16 : vector<1x1x32xf32> to vector<8x8x32xf32>
    %18 = arith.mulf %14, %17 : vector<8x8x32xf32>
    %cst_12 = arith.constant dense<0.000000e+00> : vector<8x8xf32>
    %19 = vector.multi_reduction <add>, %18, %cst_12 [2] : vector<8x8x32xf32> to vector<8x8xf32>
    %cst_13 = arith.constant dense<0xFF800000> : vector<8xf32>
    %20 = vector.multi_reduction <maximumf>, %19, %cst_13 [1] : vector<8x8xf32> to vector<8xf32>
    %21 = vector.shape_cast %20 : vector<8xf32> to vector<8x1xf32>
    %22 = vector.broadcast %21 : vector<8x1xf32> to vector<8x8xf32>
    %23 = arith.subf %19, %22 : vector<8x8xf32>
    %24 = math.exp %23 : vector<8x8xf32>
    %cst_14 = arith.constant dense<0.000000e+00> : vector<8xf32>
    %25 = vector.multi_reduction <add>, %24, %cst_14 [1] : vector<8x8xf32> to vector<8xf32>
    %26 = vector.shape_cast %25 : vector<8xf32> to vector<8x1xf32>
    %27 = tpu.reciprocal %26 : vector<8x1xf32> -> vector<8x1xf32>
    %28 = vector.broadcast %27 : vector<8x1xf32> to vector<8x8xf32>
    %29 = arith.mulf %24, %28 : vector<8x8xf32>
    %30 = vector.shape_cast %29 : vector<8x8xf32> to vector<8x1x8xf32>
    "tpu.trace_start"() <{level = 10 : i32, message = "bqs,bsd->bqd"}> : () -> ()
    %cst_15 = arith.constant dense<0.000000e+00> : vector<8x1x32xf32>
    %31 = tpu.matmul %30, %0, %cst_15 {dimension_numbers = #tpu.dot_dimension_numbers<[2], [1], [1], [2], [0, 0, 0, 1, 1, 2], [0], [0]>} : vector<8x1x8xf32>, vector<8x8x32xf32>, vector<8x1x32xf32> -> vector<8x1x32xf32>
    "tpu.trace_stop"() : () -> ()
    %32 = vector.shape_cast %31 : vector<8x1x32xf32> to vector<8x32xf32>
    %c0_16 = arith.constant 0 : index
    %c0_17 = arith.constant 0 : index
    %33 = vector.load %arg6[%c0_16, %c0_17] : memref<8x32xf32, #tpu.memory_space<vmem>>, vector<8x32xf32>
    tpu.vector_store %arg6[%c0_16, %c0_17], %32 {strides = array<i32>} : memref<8x32xf32, #tpu.memory_space<vmem>>, vector<8x32xf32>,
    %c0_18 = arith.constant 0 : index
    %c0_19 = arith.constant 0 : index
    %34 = vector.load %arg7[%c0_18, %c0_19] : memref<8x8xf32, #tpu.memory_space<vmem>>, vector<8x8xf32>
    tpu.vector_store %arg7[%c0_18, %c0_19], %29 {strides = array<i32>} : memref<8x8xf32, #tpu.memory_space<vmem>>, vector<8x8xf32>,
    return
  }
  func.func @transform_0(%arg0: i32) -> (i32, i32, i32) {
    %c0_i32 = arith.constant 0 : i32
    %c0_i32_0 = arith.constant 0 : i32
    %c0_i32_1 = arith.constant 0 : i32
    return %arg0, %c0_i32, %c0_i32_0 : i32, i32, i32
  }
  func.func @transform_1(%arg0: i32) -> (i32, i32) {
    %c0_i32 = arith.constant 0 : i32
    %c0_i32_0 = arith.constant 0 : i32
    return %arg0, %c0_i32 : i32, i32
  }
  func.func @transform_2(%arg0: i32) -> (i32, i32) {
    %c0_i32 = arith.constant 0 : i32
    %c0_i32_0 = arith.constant 0 : i32
    %c0_i32_1 = arith.constant 0 : i32
    return %c0_i32, %c0_i32_0 : i32, i32
  }
  func.func @transform_3(%arg0: i32) -> (i32, i32) {
    %c0_i32 = arith.constant 0 : i32
    %c0_i32_0 = arith.constant 0 : i32
    %c0_i32_1 = arith.constant 0 : i32
    return %c0_i32, %c0_i32_0 : i32, i32
  }
  func.func @transform_4(%arg0: i32) -> (i32, i32) {
    %c0_i32 = arith.constant 0 : i32
    %c0_i32_0 = arith.constant 0 : i32
    %c0_i32_1 = arith.constant 0 : i32
    return %c0_i32, %c0_i32_0 : i32, i32
  }
  func.func @transform_5(%arg0: i32) -> (i32, i32) {
    %c0_i32 = arith.constant 0 : i32
    %c0_i32_0 = arith.constant 0 : i32
    return %arg0, %c0_i32 : i32, i32
  }
  func.func @transform_6(%arg0: i32) -> (i32, i32) {
    %c0_i32 = arith.constant 0 : i32
    %c0_i32_0 = arith.constant 0 : i32
    return %arg0, %c0_i32 : i32, i32
  }
}

</mosaic_0001>

<llo_original>
// kernel: tpu_custom_call.1
$region0: #{tpu_custom_call.1}
  #allocation0 [shape = 'u32[]', space=smem, size = 0x4, offset = 0x4, fixed_abs, tag = 'smem constant byte address 0x4 - core index']
  #allocation1 [shape = 'u32[72,128]{1,0:T(1,128)}', space=vmem, size = 0x9000, scoped, tag = 'internal scratch']
  %s0 = inlined_call_operand.hbm [shape: f32[8,8,32], index: 0, kind: input, shape index: {}]
  %s1 = inlined_call_operand.hbm [shape: f32[8,32], index: 1, kind: input, shape index: {}]
  %s2 = inlined_call_operand.hbm [shape: f32[32,32], index: 2, kind: input, shape index: {}]
  %s3 = inlined_call_operand.hbm [shape: f32[32,32], index: 3, kind: input, shape index: {}]
  %s4 = inlined_call_operand.vmem [shape: f32[2,32], index: 4, kind: input, shape index: {}]
  %s5 = inlined_call_operand.hbm [shape: f32[8,32], index: 5, kind: output, shape index: {0}]
  %s6 = inlined_call_operand.hbm [shape: f32[8,8], index: 6, kind: output, shape index: {1}]
  %7 = xla_tuple %s5, %s6
  %s8 = sld [smem:[#allocation0]]
  $region54: #{tpu_custom_call.1} parent=0
    _
  %s10 = ssub.s32 1, %s8
  %s11 = scalar_select 0, %s10, %s8
  $region1: #{tpu_custom_call.1} parent=0
    #allocation2 [shape = 'u8[32768]{0}', space=vmem, size = 0x8000, scoped, tag = 'input window, operand 0, single buffered']
    #allocation3 [shape = 's32[1]{0}', space=sflag, size = 0x4, scoped, tag = 'scoped memory for tpu_custom_call.1']
    #allocation4 [shape = 's32[1]{0}', space=sflag, size = 0x4, scoped, tag = 'scoped memory for tpu_custom_call.1']
    #allocation5 [shape = 'u8[4096]{0}', space=vmem, size = 0x1000, scoped, tag = 'input window, operand 1, single buffered']
    #allocation6 [shape = 's32[1]{0}', space=sflag, size = 0x4, scoped, tag = 'scoped memory for tpu_custom_call.1']
    #allocation7 [shape = 'u8[16384]{0}', space=vmem, size = 0x4000, scoped, tag = 'input window, operand 2, single buffered']
    #allocation8 [shape = 'u8[16384]{0}', space=vmem, size = 0x4000, scoped, tag = 'input window, operand 3, single buffered']
    #allocation9 [shape = 's32[1]{0}', space=sflag, size = 0x4, scoped, tag = 'scoped memory for tpu_custom_call.1']
    #allocation10 [shape = 'u8[4096]{0}', space=vmem, size = 0x1000, scoped, tag = 'output window, operand 0, single buffered']
    #allocation11 [shape = 'u8[4096]{0}', space=vmem, size = 0x1000, scoped, tag = 'output window, operand 1, single buffered']
    #allocation12 [shape = 's32[1]{0}', space=sflag, size = 0x4, scoped, tag = 'scoped memory for tpu_custom_call.1']
    %12 = vsyncpa [#allocation3], 0
    %13 = vsyncpa [#allocation6], 0
    %14 = vsyncpa [#allocation9], 0
    %15 = vsyncpa [#allocation4], 0
    %16 = vsyncpa [#allocation12], 0
    // Predicated region
    $region2: #{tpu_custom_call.1} parent=1 // pred_check
      _
    $region3: #{tpu_custom_call.1} parent=1 // pred_check_branch
      %18 = sbr.rel (0) target = $region5
    $region4: #{tpu_custom_call.1} parent=1 // pred_region
      %20 = vsyncadd [#allocation3], 0
      %s21 = sshll.u32 %s0, 4
      %s22 = int_to_ptr.hbm [resolvable:$true] %s21
      %s23 = sshll.u32 [#allocation2], 4
      %s24 = int_to_ptr.vmem [resolvable:$true] %s23
      %29 = dma.hbm_to_vmem [thread:$0]  %s22, 1024, %s24, [#allocation3], 128, 128, 8
    $region5: #{tpu_custom_call.1} parent=1 // pred_fallthru
      _
    // Predicated region
    $region6: #{tpu_custom_call.1} parent=1 // pred_check
      _
    $region7: #{tpu_custom_call.1} parent=1 // pred_check_branch
      %31 = sbr.rel (0) target = $region9
    $region8: #{tpu_custom_call.1} parent=1 // pred_region
      %33 = vsyncadd [#allocation6], 0
      %s35 = sshll.u32 %s1, 4
      %s36 = int_to_ptr.hbm [resolvable:$true] %s35
      %s37 = sshll.u32 [#allocation5], 4
      %s38 = int_to_ptr.vmem [resolvable:$true] %s37
      %40 = dma.hbm_to_vmem [thread:$0]  %s36, 128, %s38, [#allocation6]
    $region9: #{tpu_custom_call.1} parent=1 // pred_fallthru
      _
    // Predicated region
    $region10: #{tpu_custom_call.1} parent=1 // pred_check
      _
    $region11: #{tpu_custom_call.1} parent=1 // pred_check_branch
      %42 = sbr.rel (0) target = $region13
    $region12: #{tpu_custom_call.1} parent=1 // pred_region
      %44 = vsyncadd [#allocation6], 0
      %s45 = sshll.u32 %s2, 4
      %s46 = int_to_ptr.hbm [resolvable:$true] %s45
      %s47 = sshll.u32 [#allocation7], 4
      %s48 = int_to_ptr.vmem [resolvable:$true] %s47
      %53 = dma.hbm_to_vmem [thread:$0]  %s46, 512, %s48, [#allocation6], 128, 128, 8
    $region13: #{tpu_custom_call.1} parent=1 // pred_fallthru
      _
    // Predicated region
    $region14: #{tpu_custom_call.1} parent=1 // pred_check
      _
    $region15: #{tpu_custom_call.1} parent=1 // pred_check_branch
      %55 = sbr.rel (0) target = $region17
    $region16: #{tpu_custom_call.1} parent=1 // pred_region
      %57 = vsyncadd [#allocation9], 0
      %s58 = sshll.u32 %s3, 4
      %s59 = int_to_ptr.hbm [resolvable:$true] %s58
      %s60 = sshll.u32 [#allocation8], 4
      %s61 = int_to_ptr.vmem [resolvable:$true] %s60
      %66 = dma.hbm_to_vmem [thread:$0]  %s59, 512, %s61, [#allocation9], 128, 128, 8
    $region17: #{tpu_custom_call.1} parent=1 // pred_fallthru
      _
    // Predicated region
    $region18: #{tpu_custom_call.1} parent=1 // pred_check
      _
    $region19: #{tpu_custom_call.1} parent=1 // pred_check_branch
      %68 = sbr.rel (0) target = $region21
    $region20: #{tpu_custom_call.1} parent=1 // pred_region
      _
    $region21: #{tpu_custom_call.1} parent=1 // pred_fallthru
      _
    // Predicated region
    $region22: #{tpu_custom_call.1} parent=1 // pred_check
      _
    $region23: #{tpu_custom_call.1} parent=1 // pred_check_branch
      %70 = sbr.rel (0) target = $region25
    $region24: #{tpu_custom_call.1} parent=1 // pred_region
      %72 = dma.done [#allocation3], 1024
    $region25: #{tpu_custom_call.1} parent=1 // pred_fallthru
      _
    // Predicated region
    $region26: #{tpu_custom_call.1} parent=1 // pred_check
      _
    $region27: #{tpu_custom_call.1} parent=1 // pred_check_branch
      %74 = sbr.rel (0) target = $region29
    $region28: #{tpu_custom_call.1} parent=1 // pred_region
      %76 = dma.done [#allocation6], 128
    $region29: #{tpu_custom_call.1} parent=1 // pred_fallthru
      _
    // Predicated region
    $region30: #{tpu_custom_call.1} parent=1 // pred_check
      _
    $region31: #{tpu_custom_call.1} parent=1 // pred_check_branch
      %78 = sbr.rel (0) target = $region33
    $region32: #{tpu_custom_call.1} parent=1 // pred_region
      %80 = dma.done [#allocation6], 512
    $region33: #{tpu_custom_call.1} parent=1 // pred_fallthru
      _
    // Predicated region
    $region34: #{tpu_custom_call.1} parent=1 // pred_check
      _
    $region35: #{tpu_custom_call.1} parent=1 // pred_check_branch
      %82 = sbr.rel (0) target = $region37
    $region36: #{tpu_custom_call.1} parent=1 // pred_region
      %84 = dma.done [#allocation9], 512
    $region37: #{tpu_custom_call.1} parent=1 // pred_fallthru
      _
    %v85 = vld [vmem:[#allocation2] sm:$0xff]
    %v86 = vld [vmem:[#allocation2 + $0x8] sm:$0xff]
    %v87 = vld [vmem:[#allocation2 + $0x10] sm:$0xff]
    %v88 = vld [vmem:[#allocation2 + $0x18] sm:$0xff]
    %v89 = vld [vmem:[#allocation2 + $0x20] sm:$0xff]
    %v90 = vld [vmem:[#allocation2 + $0x28] sm:$0xff]
    %v91 = vld [vmem:[#allocation2 + $0x30] sm:$0xff]
    %v92 = vld [vmem:[#allocation2 + $0x38] sm:$0xff]
    %v93 = vld [vmem:[#allocation7] sm:$0xff]
    %v94 = vld [vmem:[#allocation7 + $0x8] sm:$0xff]
    %v95 = vld [vmem:[#allocation7 + $0x10] sm:$0xff]
    %v96 = vld [vmem:[#allocation7 + $0x18] sm:$0xff]
    %vm97 = vcmask 261120
    %v99 = vsel %vm97, %v85, 0
    %v102 = vsel %vm97, %v86, 0
    %v105 = vsel %vm97, %v87, 0
    %v108 = vsel %vm97, %v88, 0
    %v111 = vsel %vm97, %v89, 0
    %v114 = vsel %vm97, %v90, 0
    %v117 = vsel %vm97, %v91, 0
    %v120 = vsel %vm97, %v92, 0
    %122 = vmatpush.msra.mxu0 0.0
    %123 = vmatpush.msra.mxu0 0.0
    %124 = vmatpush.msra.mxu0 0.0
    %125 = vmatpush.msra.mxu0 0.0
    %126 = vmatpush.msra.mxu0 0.0
    %127 = vmatpush.msra.mxu0 0.0
    %128 = vmatpush.msra.mxu0 0.0
    %129 = vmatpush.msra.mxu0 0.0
    %130 = vmatpush.msra.mxu0 0.0
    %131 = vmatpush.msra.mxu0 0.0
    %132 = vmatpush.msra.mxu0 0.0
    %133 = vmatpush.msra.mxu0 0.0
    %134 = vmatpush.msra.mxu0 %v96
    %135 = vmatpush.msra.mxu0 %v95
    %136 = vmatpush.msra.mxu0 %v94
    %137 = vmatpush.msra.mxu0 %v93
    %138 = vmatmul.f32.gmra.mxu0 %v99
    %v139 = vpop.f32.mrf.mxu0
    %v140 = vadd.f32 0.0, %v139
    %141 = vmatmul.f32.gmra.mxu0 %v102
    %v142 = vpop.f32.mrf.mxu0
    %v143 = vadd.f32 0.0, %v142
    %144 = vmatmul.f32.gmra.mxu0 %v105
    %v145 = vpop.f32.mrf.mxu0
    %v146 = vadd.f32 0.0, %v145
    %147 = vmatmul.f32.gmra.mxu0 %v108
    %v148 = vpop.f32.mrf.mxu0
    %v149 = vadd.f32 0.0, %v148
    %150 = vmatmul.f32.gmra.mxu0 %v111
    %v151 = vpop.f32.mrf.mxu0
    %v152 = vadd.f32 0.0, %v151
    %153 = vmatmul.f32.gmra.mxu0 %v114
    %v154 = vpop.f32.mrf.mxu0
    %v155 = vadd.f32 0.0, %v154
    %156 = vmatmul.f32.gmra.mxu0 %v117
    %v157 = vpop.f32.mrf.mxu0
    %v158 = vadd.f32 0.0, %v157
    %159 = vmatmul.f32.gmra.mxu0 %v120
    %v160 = vpop.f32.mrf.mxu0
    %v161 = vadd.f32 0.0, %v160
    %162 = vdwg.mxu0
    %v163 = vld [vmem:[#allocation5] sm:$0xff]
    %v164 = vld [vmem:[#allocation8] sm:$0xff]
    %v165 = vld [vmem:[#allocation8 + $0x8] sm:$0xff]
    %v166 = vld [vmem:[#allocation8 + $0x10] sm:$0xff]
    %v167 = vld [vmem:[#allocation8 + $0x18] sm:$0xff]
    %v168 = vld [vmem:[%s4] sm:$0x1]
    %v169 = vperm.slane %v168, 0
    %v171 = vsel %vm97, %v163, 0
    %173 = vmatpush.msra.mxu0 0.0
    %174 = vmatpush.msra.mxu0 0.0
    %175 = vmatpush.msra.mxu0 0.0
    %176 = vmatpush.msra.mxu0 0.0
    %177 = vmatpush.msra.mxu0 0.0
    %178 = vmatpush.msra.mxu0 0.0
    %179 = vmatpush.msra.mxu0 0.0
    %180 = vmatpush.msra.mxu0 0.0
    %181 = vmatpush.msra.mxu0 0.0
    %182 = vmatpush.msra.mxu0 0.0
    %183 = vmatpush.msra.mxu0 0.0
    %184 = vmatpush.msra.mxu0 0.0
    %185 = vmatpush.msra.mxu0 %v167
    %186 = vmatpush.msra.mxu0 %v166
    %187 = vmatpush.msra.mxu0 %v165
    %188 = vmatpush.msra.mxu0 %v164
    %189 = vmatmul.f32.gmra.mxu0 %v171
    %v190 = vpop.f32.mrf.mxu0
    %v191 = vadd.f32 %v169, %v190
    %192 = vdwg.mxu0
    %v194 = vrot.slane %v191, 1
    %v195 = vrot.slane %v191, 2
    %v196 = vrot.slane %v191, 3
    %v197 = vrot.slane %v191, 4
    %v198 = vrot.slane %v191, 5
    %v199 = vrot.slane %v191, 6
    %v200 = vrot.slane %v191, 7
    %v201 = vperm.slane %v191, 0
    %v202 = vperm.slane %v194, 0
    %v203 = vperm.slane %v195, 0
    %v204 = vperm.slane %v196, 0
    %v205 = vperm.slane %v197, 0
    %v206 = vperm.slane %v198, 0
    %v207 = vperm.slane %v199, 0
    %v208 = vperm.slane %v200, 0
    %v217 = vadd.f32 %v140, %v201
    %v218 = vadd.f32 %v143, %v202
    %v219 = vadd.f32 %v146, %v203
    %v220 = vadd.f32 %v149, %v204
    %v221 = vadd.f32 %v152, %v205
    %v222 = vadd.f32 %v155, %v206
    %v223 = vadd.f32 %v158, %v207
    %v224 = vadd.f32 %v161, %v208
    %v225 = vtanh.pop %v217
    %v226 = vtanh.pop %v218
    %v227 = vtanh.pop %v219
    %v228 = vtanh.pop %v220
    %v229 = vtanh.pop %v221
    %v230 = vtanh.pop %v222
    %v231 = vtanh.pop %v223
    %v232 = vtanh.pop %v224
    %v233 = vld [vmem:[%s4 + $0x1] sm:$0x1]
    %v234 = vperm.slane %v233, 0
    %v235 = vmul.f32 %v225, %v234
    %v236 = vmul.f32 %v226, %v234
    %v237 = vmul.f32 %v227, %v234
    %v238 = vmul.f32 %v228, %v234
    %v239 = vmul.f32 %v229, %v234
    %v240 = vmul.f32 %v230, %v234
    %v241 = vmul.f32 %v231, %v234
    %v242 = vmul.f32 %v232, %v234
    %v243 = vsel %vm97, %v235, 0.0
    %244 = vadd.xlane.f32.xlu0 %v243
    %v245 = vpop.xlane.xlu0 %244
    %v246 = vsel %vm97, %v236, 0.0
    %247 = vadd.xlane.f32.xlu0 %v246
    %v248 = vpop.xlane.xlu0 %247
    %v249 = vsel %vm97, %v237, 0.0
    %250 = vadd.xlane.f32.xlu0 %v249
    %v251 = vpop.xlane.xlu0 %250
    %v252 = vsel %vm97, %v238, 0.0
    %253 = vadd.xlane.f32.xlu0 %v252
    %v254 = vpop.xlane.xlu0 %253
    %v255 = vsel %vm97, %v239, 0.0
    %256 = vadd.xlane.f32.xlu0 %v255
    %v257 = vpop.xlane.xlu0 %256
    %v258 = vsel %vm97, %v240, 0.0
    %259 = vadd.xlane.f32.xlu0 %v258
    %v260 = vpop.xlane.xlu0 %259
    %v261 = vsel %vm97, %v241, 0.0
    %262 = vadd.xlane.f32.xlu0 %v261
    %v263 = vpop.xlane.xlu0 %262
    %v264 = vsel %vm97, %v242, 0.0
    %265 = vadd.xlane.f32.xlu0 %v264
    %v266 = vpop.xlane.xlu0 %265
    %v275 = vlaneseq
    %v276 = vand.u32 %v275, 127
    %v277 = vperm.slane %v245, %v276
    %v278 = vperm.slane %v248, %v276
    %v279 = vperm.slane %v251, %v276
    %v280 = vperm.slane %v254, %v276
    %v281 = vperm.slane %v257, %v276
    %v282 = vperm.slane %v260, %v276
    %v283 = vperm.slane %v263, %v276
    %v284 = vperm.slane %v266, %v276
    %vm285 = vcmask 1041409
    %v286 = vsel %vm285, %v278, %v277
    %vm287 = vcmask 1042434
    %v288 = vsel %vm287, %v279, %v286
    %vm289 = vcmask 1043459
    %v290 = vsel %vm289, %v280, %v288
    %vm291 = vcmask 1044484
    %v292 = vsel %vm291, %v281, %v290
    %vm293 = vcmask 1045509
    %v294 = vsel %vm293, %v282, %v292
    %vm295 = vcmask 1046534
    %v296 = vsel %vm295, %v283, %v294
    %vm297 = vcmask 1047559
    %v298 = vsel %vm297, %v284, %v296
    %vm300 = vcmask 64512
    %v301 = vsel %vm300, %v298, -inf
    %302 = vmax.xlane.f32.xlu0 %v301
    %v303 = vpop.xlane.xlu0 %302
    %v305 = vperm.slane %v303, 0
    %v306 = vperm.slane %v303, 1
    %v307 = vperm.slane %v303, 2
    %v308 = vperm.slane %v303, 3
    %v309 = vperm.slane %v303, 4
    %v310 = vperm.slane %v303, 5
    %v311 = vperm.slane %v303, 6
    %v312 = vperm.slane %v303, 7
    %v321 = vsub.f32 %v245, %v305
    %v322 = vsub.f32 %v248, %v306
    %v323 = vsub.f32 %v251, %v307
    %v324 = vsub.f32 %v254, %v308
    %v325 = vsub.f32 %v257, %v309
    %v326 = vsub.f32 %v260, %v310
    %v327 = vsub.f32 %v263, %v311
    %v328 = vsub.f32 %v266, %v312
    %v329 = vmul.f32 %v321, 1.442695
    %v330 = vpow.pop %v329
    %v331 = vmul.f32 %v322, 1.442695
    %v332 = vpow.pop %v331
    %v333 = vmul.f32 %v323, 1.442695
    %v334 = vpow.pop %v333
    %v335 = vmul.f32 %v324, 1.442695
    %v336 = vpow.pop %v335
    %v337 = vmul.f32 %v325, 1.442695
    %v338 = vpow.pop %v337
    %v339 = vmul.f32 %v326, 1.442695
    %v340 = vpow.pop %v339
    %v341 = vmul.f32 %v327, 1.442695
    %v342 = vpow.pop %v341
    %v343 = vmul.f32 %v328, 1.442695
    %v344 = vpow.pop %v343
    %353 = vset.pattern.permute.xlu0 0
    %354 = vperm.xlu0 %353, %v330
    %v355 = vpop.permute.xlu0 %354
    %356 = vset.pattern.permute.xlu0 0
    %357 = vperm.xlu0 %356, %v332
    %v358 = vpop.permute.xlu0 %357
    %359 = vset.pattern.permute.xlu0 0
    %360 = vperm.xlu0 %359, %v334
    %v361 = vpop.permute.xlu0 %360
    %362 = vset.pattern.permute.xlu0 0
    %363 = vperm.xlu0 %362, %v336
    %v364 = vpop.permute.xlu0 %363
    %365 = vset.pattern.permute.xlu0 0
    %366 = vperm.xlu0 %365, %v338
    %v367 = vpop.permute.xlu0 %366
    %368 = vset.pattern.permute.xlu0 0
    %369 = vperm.xlu0 %368, %v340
    %v370 = vpop.permute.xlu0 %369
    %371 = vset.pattern.permute.xlu0 0
    %372 = vperm.xlu0 %371, %v342
    %v373 = vpop.permute.xlu0 %372
    %374 = vset.pattern.permute.xlu0 0
    %375 = vperm.xlu0 %374, %v344
    %v376 = vpop.permute.xlu0 %375
    %v377 = vperm.slane %v355, %v276
    %v378 = vperm.slane %v358, %v276
    %v379 = vperm.slane %v361, %v276
    %v380 = vperm.slane %v364, %v276
    %v381 = vperm.slane %v367, %v276
    %v382 = vperm.slane %v370, %v276
    %v383 = vperm.slane %v373, %v276
    %v384 = vperm.slane %v376, %v276
    %v385 = vsel %vm285, %v378, %v377
    %v386 = vsel %vm287, %v379, %v385
    %v387 = vsel %vm289, %v380, %v386
    %v388 = vsel %vm291, %v381, %v387
    %v389 = vsel %vm293, %v382, %v388
    %v390 = vsel %vm295, %v383, %v389
    %v391 = vsel %vm297, %v384, %v390
    %v393 = vsel %vm300, %v391, 0.0
    %394 = vadd.xlane.f32.xlu0 %v393
    %v395 = vpop.xlane.xlu0 %394
    %v396 = vrcp.pop %v395
    %v397 = vmul.f32 %v395, %v396
    %v398 = vsub.f32 1.0, %v397
    %v399 = vmul.f32 %v396, %v398
    %v400 = vadd.f32 %v396, %v399
    %vm401 = vweird.f32 %v395
    %vm402 = vweird.f32 %v396
    %vm403 = vmor %vm401, %vm402
    %v404 = vsel %vm403, %v396, %v400
    %v405 = vand.u32 2147483647, %v395
    %vm406 = vcmp.eq.f32.partialorder %v405, 8.507059e+37
    %v407 = vand.u32 %v395, 2147483648
    %v408 = vor.u32 1.1754944e-38, %v407
    %v409 = vsel %vm406, %v408, %v404
    %v411 = vperm.slane %v409, 0
    %v412 = vperm.slane %v409, 1
    %v413 = vperm.slane %v409, 2
    %v414 = vperm.slane %v409, 3
    %v415 = vperm.slane %v409, 4
    %v416 = vperm.slane %v409, 5
    %v417 = vperm.slane %v409, 6
    %v418 = vperm.slane %v409, 7
    %v427 = vmul.f32 %v330, %v411
    %v428 = vmul.f32 %v332, %v412
    %v429 = vmul.f32 %v334, %v413
    %v430 = vmul.f32 %v336, %v414
    %v431 = vmul.f32 %v338, %v415
    %v432 = vmul.f32 %v340, %v416
    %v433 = vmul.f32 %v342, %v417
    %v434 = vmul.f32 %v344, %v418
    %436 = vset.pattern.permute.xlu0 0
    %437 = vperm.xlu0 %436, %v427
    %v438 = vpop.permute.xlu0 %437
    %v439 = vperm.slane %v438, %v276
    %v440 = vsel %vm300, %v439, 0
    %442 = vmatpush.msra.mxu0 0.0
    %443 = vmatpush.msra.mxu0 0.0
    %444 = vmatpush.msra.mxu0 0.0
    %445 = vmatpush.msra.mxu0 0.0
    %446 = vmatpush.msra.mxu0 0.0
    %447 = vmatpush.msra.mxu0 0.0
    %448 = vmatpush.msra.mxu0 0.0
    %449 = vmatpush.msra.mxu0 0.0
    %450 = vmatpush.msra.mxu0 0.0
    %451 = vmatpush.msra.mxu0 0.0
    %452 = vmatpush.msra.mxu0 0.0
    %453 = vmatpush.msra.mxu0 0.0
    %454 = vmatpush.msra.mxu0 0.0
    %455 = vmatpush.msra.mxu0 0.0
    %456 = vmatpush.msra.mxu0 0.0
    %457 = vmatpush.msra.mxu0 %v85
    %458 = vmatmul.f32.gmra.mxu0 %v440
    %v459 = vpop.f32.mrf.mxu0
    %v460 = vadd.f32 0.0, %v459
    %461 = vdwg.mxu0
    %463 = vset.pattern.permute.xlu0 0
    %464 = vperm.xlu0 %463, %v428
    %v465 = vpop.permute.xlu0 %464
    %v466 = vperm.slane %v465, %v276
    %v467 = vsel %vm300, %v466, 0
    %469 = vmatpush.msra.mxu0 0.0
    %470 = vmatpush.msra.mxu0 0.0
    %471 = vmatpush.msra.mxu0 0.0
    %472 = vmatpush.msra.mxu0 0.0
    %473 = vmatpush.msra.mxu0 0.0
    %474 = vmatpush.msra.mxu0 0.0
    %475 = vmatpush.msra.mxu0 0.0
    %476 = vmatpush.msra.mxu0 0.0
    %477 = vmatpush.msra.mxu0 0.0
    %478 = vmatpush.msra.mxu0 0.0
    %479 = vmatpush.msra.mxu0 0.0
    %480 = vmatpush.msra.mxu0 0.0
    %481 = vmatpush.msra.mxu0 0.0
    %482 = vmatpush.msra.mxu0 0.0
    %483 = vmatpush.msra.mxu0 0.0
    %484 = vmatpush.msra.mxu0 %v86
    %485 = vmatmul.f32.gmra.mxu0 %v467
    %v486 = vpop.f32.mrf.mxu0
    %v487 = vadd.f32 0.0, %v486
    %488 = vdwg.mxu0
    %490 = vset.pattern.permute.xlu0 0
    %491 = vperm.xlu0 %490, %v429
    %v492 = vpop.permute.xlu0 %491
    %v493 = vperm.slane %v492, %v276
    %v494 = vsel %vm300, %v493, 0
    %496 = vmatpush.msra.mxu0 0.0
    %497 = vmatpush.msra.mxu0 0.0
    %498 = vmatpush.msra.mxu0 0.0
    %499 = vmatpush.msra.mxu0 0.0
    %500 = vmatpush.msra.mxu0 0.0
    %501 = vmatpush.msra.mxu0 0.0
    %502 = vmatpush.msra.mxu0 0.0
    %503 = vmatpush.msra.mxu0 0.0
    %504 = vmatpush.msra.mxu0 0.0
    %505 = vmatpush.msra.mxu0 0.0
    %506 = vmatpush.msra.mxu0 0.0
    %507 = vmatpush.msra.mxu0 0.0
    %508 = vmatpush.msra.mxu0 0.0
    %509 = vmatpush.msra.mxu0 0.0
    %510 = vmatpush.msra.mxu0 0.0
    %511 = vmatpush.msra.mxu0 %v87
    %512 = vmatmul.f32.gmra.mxu0 %v494
    %v513 = vpop.f32.mrf.mxu0
    %v514 = vadd.f32 0.0, %v513
    %515 = vdwg.mxu0
    %517 = vset.pattern.permute.xlu0 0
    %518 = vperm.xlu0 %517, %v430
    %v519 = vpop.permute.xlu0 %518
    %v520 = vperm.slane %v519, %v276
    %v521 = vsel %vm300, %v520, 0
    %523 = vmatpush.msra.mxu0 0.0
    %524 = vmatpush.msra.mxu0 0.0
    %525 = vmatpush.msra.mxu0 0.0
    %526 = vmatpush.msra.mxu0 0.0
    %527 = vmatpush.msra.mxu0 0.0
    %528 = vmatpush.msra.mxu0 0.0
    %529 = vmatpush.msra.mxu0 0.0
    %530 = vmatpush.msra.mxu0 0.0
    %531 = vmatpush.msra.mxu0 0.0
    %532 = vmatpush.msra.mxu0 0.0
    %533 = vmatpush.msra.mxu0 0.0
    %534 = vmatpush.msra.mxu0 0.0
    %535 = vmatpush.msra.mxu0 0.0
    %536 = vmatpush.msra.mxu0 0.0
    %537 = vmatpush.msra.mxu0 0.0
    %538 = vmatpush.msra.mxu0 %v88
    %539 = vmatmul.f32.gmra.mxu0 %v521
    %v540 = vpop.f32.mrf.mxu0
    %v541 = vadd.f32 0.0, %v540
    %542 = vdwg.mxu0
    %544 = vset.pattern.permute.xlu0 0
    %545 = vperm.xlu0 %544, %v431
    %v546 = vpop.permute.xlu0 %545
    %v547 = vperm.slane %v546, %v276
    %v548 = vsel %vm300, %v547, 0
    %550 = vmatpush.msra.mxu0 0.0
    %551 = vmatpush.msra.mxu0 0.0
    %552 = vmatpush.msra.mxu0 0.0
    %553 = vmatpush.msra.mxu0 0.0
    %554 = vmatpush.msra.mxu0 0.0
    %555 = vmatpush.msra.mxu0 0.0
    %556 = vmatpush.msra.mxu0 0.0
    %557 = vmatpush.msra.mxu0 0.0
    %558 = vmatpush.msra.mxu0 0.0
    %559 = vmatpush.msra.mxu0 0.0
    %560 = vmatpush.msra.mxu0 0.0
    %561 = vmatpush.msra.mxu0 0.0
    %562 = vmatpush.msra.mxu0 0.0
    %563 = vmatpush.msra.mxu0 0.0
    %564 = vmatpush.msra.mxu0 0.0
    %565 = vmatpush.msra.mxu0 %v89
    %566 = vmatmul.f32.gmra.mxu0 %v548
    %v567 = vpop.f32.mrf.mxu0
    %v568 = vadd.f32 0.0, %v567
    %569 = vdwg.mxu0
    %571 = vset.pattern.permute.xlu0 0
    %572 = vperm.xlu0 %571, %v432
    %v573 = vpop.permute.xlu0 %572
    %v574 = vperm.slane %v573, %v276
    %v575 = vsel %vm300, %v574, 0
    %577 = vmatpush.msra.mxu0 0.0
    %578 = vmatpush.msra.mxu0 0.0
    %579 = vmatpush.msra.mxu0 0.0
    %580 = vmatpush.msra.mxu0 0.0
    %581 = vmatpush.msra.mxu0 0.0
    %582 = vmatpush.msra.mxu0 0.0
    %583 = vmatpush.msra.mxu0 0.0
    %584 = vmatpush.msra.mxu0 0.0
    %585 = vmatpush.msra.mxu0 0.0
    %586 = vmatpush.msra.mxu0 0.0
    %587 = vmatpush.msra.mxu0 0.0
    %588 = vmatpush.msra.mxu0 0.0
    %589 = vmatpush.msra.mxu0 0.0
    %590 = vmatpush.msra.mxu0 0.0
    %591 = vmatpush.msra.mxu0 0.0
    %592 = vmatpush.msra.mxu0 %v90
    %593 = vmatmul.f32.gmra.mxu0 %v575
    %v594 = vpop.f32.mrf.mxu0
    %v595 = vadd.f32 0.0, %v594
    %596 = vdwg.mxu0
    %598 = vset.pattern.permute.xlu0 0
    %599 = vperm.xlu0 %598, %v433
    %v600 = vpop.permute.xlu0 %599
    %v601 = vperm.slane %v600, %v276
    %v602 = vsel %vm300, %v601, 0
    %604 = vmatpush.msra.mxu0 0.0
    %605 = vmatpush.msra.mxu0 0.0
    %606 = vmatpush.msra.mxu0 0.0
    %607 = vmatpush.msra.mxu0 0.0
    %608 = vmatpush.msra.mxu0 0.0
    %609 = vmatpush.msra.mxu0 0.0
    %610 = vmatpush.msra.mxu0 0.0
    %611 = vmatpush.msra.mxu0 0.0
    %612 = vmatpush.msra.mxu0 0.0
    %613 = vmatpush.msra.mxu0 0.0
    %614 = vmatpush.msra.mxu0 0.0
    %615 = vmatpush.msra.mxu0 0.0
    %616 = vmatpush.msra.mxu0 0.0
    %617 = vmatpush.msra.mxu0 0.0
    %618 = vmatpush.msra.mxu0 0.0
    %619 = vmatpush.msra.mxu0 %v91
    %620 = vmatmul.f32.gmra.mxu0 %v602
    %v621 = vpop.f32.mrf.mxu0
    %v622 = vadd.f32 0.0, %v621
    %623 = vdwg.mxu0
    %625 = vset.pattern.permute.xlu0 0
    %626 = vperm.xlu0 %625, %v434
    %v627 = vpop.permute.xlu0 %626
    %v628 = vperm.slane %v627, %v276
    %v629 = vsel %vm300, %v628, 0
    %631 = vmatpush.msra.mxu0 0.0
    %632 = vmatpush.msra.mxu0 0.0
    %633 = vmatpush.msra.mxu0 0.0
    %634 = vmatpush.msra.mxu0 0.0
    %635 = vmatpush.msra.mxu0 0.0
    %636 = vmatpush.msra.mxu0 0.0
    %637 = vmatpush.msra.mxu0 0.0
    %638 = vmatpush.msra.mxu0 0.0
    %639 = vmatpush.msra.mxu0 0.0
    %640 = vmatpush.msra.mxu0 0.0
    %641 = vmatpush.msra.mxu0 0.0
    %642 = vmatpush.msra.mxu0 0.0
    %643 = vmatpush.msra.mxu0 0.0
    %644 = vmatpush.msra.mxu0 0.0
    %645 = vmatpush.msra.mxu0 0.0
    %646 = vmatpush.msra.mxu0 %v92
    %647 = vmatmul.f32.gmra.mxu0 %v629
    %v648 = vpop.f32.mrf.mxu0
    %v649 = vadd.f32 0.0, %v648
    %650 = vdwg.mxu0
    %v659 = vrot.slane %v487, 7
    %v660 = vsel %vm285, %v659, %v460
    %v661 = vrot.slane %v514, 6
    %v662 = vsel %vm287, %v661, %v660
    %v663 = vrot.slane %v541, 5
    %v664 = vsel %vm289, %v663, %v662
    %v665 = vrot.slane %v568, 4
    %v666 = vsel %vm291, %v665, %v664
    %v667 = vrot.slane %v595, 3
    %v668 = vsel %vm293, %v667, %v666
    %v669 = vrot.slane %v622, 2
    %v670 = vsel %vm295, %v669, %v668
    %v671 = vrot.slane %v649, 1
    %v672 = vsel %vm297, %v671, %v670
    %674 = vst.msk [vmem:[#allocation10] sm:$0xff] %vm97, %v672
    %v675 = vsel %vm285, %v466, %v439
    %v676 = vsel %vm287, %v493, %v675
    %v677 = vsel %vm289, %v520, %v676
    %v678 = vsel %vm291, %v547, %v677
    %v679 = vsel %vm293, %v574, %v678
    %v680 = vsel %vm295, %v601, %v679
    %v681 = vsel %vm297, %v628, %v680
    %683 = vst.msk [vmem:[#allocation11] sm:$0xff] %vm300, %v681
    // Predicated region
    $region38: #{tpu_custom_call.1} parent=1 // pred_check
      _
    $region39: #{tpu_custom_call.1} parent=1 // pred_check_branch
      %685 = sbr.rel (0) target = $region41
    $region40: #{tpu_custom_call.1} parent=1 // pred_region
      %687 = vsyncadd [#allocation4], 0
      %s689 = sshll.u32 [#allocation10], 4
      %s690 = int_to_ptr.vmem [resolvable:$true] %s689
      %s691 = sshll.u32 %s5, 4
      %s692 = int_to_ptr.hbm [resolvable:$true] %s691
      %694 = dma.vmem_to_hbm [thread:$0]  %s690, 128, %s692, [#allocation4]
    $region41: #{tpu_custom_call.1} parent=1 // pred_fallthru
      _
    // Predicated region
    $region42: #{tpu_custom_call.1} parent=1 // pred_check
      _
    $region43: #{tpu_custom_call.1} parent=1 // pred_check_branch
      %696 = sbr.rel (0) target = $region45
    $region44: #{tpu_custom_call.1} parent=1 // pred_region
      %698 = vsyncadd [#allocation12], 0
      %s700 = sshll.u32 [#allocation11], 4
      %s701 = int_to_ptr.vmem [resolvable:$true] %s700
      %s702 = sshll.u32 %s6, 4
      %s703 = int_to_ptr.hbm [resolvable:$true] %s702
      %705 = dma.vmem_to_hbm [thread:$0]  %s701, 128, %s703, [#allocation12]
    $region45: #{tpu_custom_call.1} parent=1 // pred_fallthru
      _
    // Predicated region
    $region46: #{tpu_custom_call.1} parent=1 // pred_check
      _
    $region47: #{tpu_custom_call.1} parent=1 // pred_check_branch
      %707 = sbr.rel (0) target = $region49
    $region48: #{tpu_custom_call.1} parent=1 // pred_region
      %709 = dma.done [#allocation4], 128
    $region49: #{tpu_custom_call.1} parent=1 // pred_fallthru
      _
    // Predicated region
    $region50: #{tpu_custom_call.1} parent=1 // pred_check
      _
    $region51: #{tpu_custom_call.1} parent=1 // pred_check_branch
      %711 = sbr.rel (0) target = $region53
    $region52: #{tpu_custom_call.1} parent=1 // pred_region
      %713 = dma.done [#allocation12], 128
    $region53: #{tpu_custom_call.1} parent=1 // pred_fallthru
      _
    %714 = vsyncpa [#allocation3], 1
    %715 = vsyncpa [#allocation6], 1
    %716 = vsyncpa [#allocation9], 1
    %717 = vsyncpa [#allocation4], 1
    %718 = vsyncpa [#allocation12], 1

</llo_original>
